<compile_context>
chip_gen: v6e
topology: v6e:2x2x1
jax: 0.10.0
libtpu: 0.0.40
codegen_flags: <defaults>
</compile_context>

<pallas_src>
import math

import jax
import jax.numpy as jnp
from jax import lax
from jax.experimental import pallas as pl
from jax.experimental.pallas import tpu as pltpu


_CHUNK = 64  # sublane rows per in-kernel compute chunk (bounds vreg live range)


def _denoiser_kernel(w_ref, b_ref, x_ref, o_ref):
    """Fused FiLM + 1x1 channel-mix on a sublane/lane-dense tile.

    w_ref : SMEM (B, C*C) f32   fused per-batch conv weights  W'[b,d,c] at [b, d*C + c]
    b_ref : SMEM (B, C)   f32   fused per-batch conv bias     b'[b,d]
    x_ref : VMEM (Bblk, C, S, 128)
    o_ref : VMEM (Bblk, C, S, 128)
    """
    Bblk, C, S, L = o_ref.shape
    g = pl.program_id(0)  # batch-block index

    # Pick an in-kernel sublane chunk that divides S so each vector value is
    # only ~chunk/8 vregs (keeps ~3 live values; no spills even for big tiles).
    if S % _CHUNK == 0:
        chunk = _CHUNK
    else:
        chunk = S
        for cand in range(min(_CHUNK, (S // 8) * 8), 7, -8):
            if S % cand == 0:
                chunk = cand
                break
    n_chunks = S // chunk

    def process(s0):
        for i in range(Bblk):                     # static unroll (Bblk small)
            b = g * Bblk + i                      # global batch index
            for d in range(C):                    # static unroll over out channels
                acc = None
                for c in range(C):                # static unroll over in channels
                    xc = x_ref[i, c, pl.ds(s0, chunk), :].astype(jnp.float32)
                    term = w_ref[b, d * C + c] * xc        # sreg * vreg (VPU)
                    acc = term if acc is None else acc + term
                acc = acc + b_ref[b, d]
                o_ref[i, d, pl.ds(s0, chunk), :] = acc.astype(o_ref.dtype)

    def body(j, carry):
        process(pl.multiple_of(j * chunk, chunk))
        return carry

    lax.fori_loop(0, n_chunks, body, 0)


def _timestep_embedding(t, dim):
    half = dim // 2  # even embedding dim asserted by caller
    freqs = jnp.exp(-math.log(10000.0) * jnp.arange(half, dtype=jnp.float32) / half)
    args = t[:, None] * freqs[None, :]
    return jnp.concatenate([jnp.sin(args), jnp.cos(args)], axis=-1)


def _pick_s_tile(s_total, s_target, s_cap):
    """Pick the per-grid-step sublane tile.

    1. whole dim when the image is small enough,
    2. else the largest (multiple of 64, then of 8) divisor of s_total <= s_target,
    3. else the whole dim if it fits the VMEM budget,
    4. else a non-dividing multiple-of-8 tile (Pallas masks the partial last block).
    """
    if s_total <= s_target:
        return s_total
    for step in (_CHUNK, 8):
        t = (min(s_target, s_total) // step) * step
        while t >= step:
            if s_total % t == 0:
                return t
            t -= step
    if s_total <= s_cap:
        return s_total
    return max(8, min((s_target // 8) * 8, (s_cap // 8) * 8))


def denoiser_forward(x_nchw, t, text_emb, params, *,
                     target_step_bytes=4 << 20,
                     vmem_budget_bytes=24 << 20):
    """x_nchw: [B, C, H, W]; t: [B] f32; text_emb: [B, E] f32."""
    B, C, H, W = x_nchw.shape
    HW = H * W
    E = text_emb.shape[-1]
    assert E % 2 == 0, "timestep embedding dim must be even"
    itemsize = x_nchw.dtype.itemsize

    # --- glue: conditioning -> FiLM, folded into per-batch 1x1-conv weights ----
    cond = text_emb + _timestep_embedding(t, E)                       # [B, E]
    film = cond @ params["w_film"] + params["b_film"]                 # [B, 2C]
    scale, shift = film[:, :C], film[:, C:]                           # [B, C] each
    w_out = params["w_out"].astype(jnp.float32)                       # [C, C]
    b_out = params["b_out"].astype(jnp.float32)                       # [C]
    # out[b,d,p] = b'[b,d] + sum_c W'[b,d,c] * x[b,c,p]
    w_fused = (w_out[None, :, :] * (1.0 + scale)[:, None, :]).reshape(B, C * C)
    b_fused = b_out[None, :] + shift @ w_out.T                        # [B, C]
    w_fused = w_fused.astype(jnp.float32)
    b_fused = b_fused.astype(jnp.float32)

    # --- glue: NCHW -> (B, C, HW/128, 128); pure reshape when HW % 128 == 0 ----
    x = x_nchw.reshape(B, C, HW)
    hw_pad = ((HW + 127) // 128) * 128
    if hw_pad != HW:
        # TODO(synk): unaligned H*W costs one extra HBM copy for padding.
        x = jnp.pad(x, ((0, 0), (0, 0), (0, hw_pad - HW)))
    s_total = hw_pad // 128
    x = x.reshape(B, C, s_total, 128)

    # --- tile selection --------------------------------------------------------
    per_image_bytes = 2 * C * s_total * 128 * itemsize                # in + out, one image
    bblk = 1
    if per_image_bytes < (1 << 20) and B >= 4:
        # Tiny images: pack several batch elements per step, but keep >= 2 grid
        # points on the batch axis so both v7x TensorCores stay busy.
        for cand in range(B // 2, 0, -1):
            if B % cand == 0 and cand * per_image_bytes <= target_step_bytes:
                bblk = cand
                break

    row_bytes = 2 * bblk * C * 128 * itemsize                         # in+out bytes / sublane row
    s_cap = max(8, vmem_budget_bytes // (2 * row_bytes))              # double-buffered in+out
    s_target = max(8, min(target_step_bytes // row_bytes, s_cap))
    s_tile = _pick_s_tile(s_total, s_target, s_cap)

    grid = (B // bblk, pl.cdiv(s_total, s_tile))

    block_bytes = 2 * bblk * C * s_tile * 128 * itemsize              # one in + one out block
    vmem_limit = int(max(32 << 20, min(2 * block_bytes + (8 << 20), 48 << 20)))

    out = pl.pallas_call(
        _denoiser_kernel,
        out_shape=jax.ShapeDtypeStruct((B, C, s_total, 128), x.dtype),
        grid_spec=pltpu.PrefetchScalarGridSpec(
            num_scalar_prefetch=0,
            grid=grid,
            in_specs=[
                pl.BlockSpec(memory_space=pltpu.MemorySpace.SMEM),    # W' (resident scalars)
                pl.BlockSpec(memory_space=pltpu.MemorySpace.SMEM),    # b' (resident scalars)
                pl.BlockSpec((bblk, C, s_tile, 128), lambda g, s: (g, 0, s, 0)),  # x
            ],
            out_specs=pl.BlockSpec((bblk, C, s_tile, 128), lambda g, s: (g, 0, s, 0)),
        ),
        compiler_params=pltpu.CompilerParams(
            dimension_semantics=("parallel", "parallel"),
            vmem_limit_bytes=vmem_limit),
    )(w_fused, b_fused, x)

    # --- glue: back to NCHW (pure reshape; slice only if we padded) ------------
    out = out.reshape(B, C, hw_pad)
    if hw_pad != HW:
        out = out[:, :, :HW]
    return out.reshape(B, C, H, W)


def _reference_forward(x_nchw, t, text_emb, params):
    """Pure-JAX reference with identical semantics, for correctness check."""
    B, C, H, W = x_nchw.shape
    E = text_emb.shape[-1]
    cond = text_emb + _timestep_embedding(t, E)
    film = cond @ params["w_film"] + params["b_film"]                 # [B, 2C]
    scale, shift = film[:, :C], film[:, C:]
    h = x_nchw * (1.0 + scale)[:, :, None, None] + shift[:, :, None, None]
    out = jnp.einsum("bchw,dc->bdhw", h, params["w_out"]) + params["b_out"][None, :, None, None]
    return out


if __name__ == "__main__":
    def make_inputs(B, C, H, W, E, seed=0):
        key = jax.random.PRNGKey(seed)
        kx, kt, ke, k1, k2, k3, k4 = jax.random.split(key, 7)
        x = jax.random.normal(kx, (B, C, H, W), dtype=jnp.float32)
        t = jax.random.uniform(kt, (B,), dtype=jnp.float32, minval=0.0, maxval=1000.0)
        emb = jax.random.normal(ke, (B, E), dtype=jnp.float32)
        params = {
            "w_film": jax.random.normal(k1, (E, 2 * C), dtype=jnp.float32) * 0.1,
            "b_film": jax.random.normal(k2, (2 * C,), dtype=jnp.float32) * 0.1,
            "w_out": jax.random.normal(k3, (C, C), dtype=jnp.float32) * 0.1,
            "b_out": jax.random.normal(k4, (C,), dtype=jnp.float32) * 0.1,
        }
        return x, t, emb, params

    def check(B, C, H, W, E, **kw):
        x, t, emb, params = make_inputs(B, C, H, W, E)
        ref = _reference_forward(x, t, emb, params)
        out = jax.block_until_ready(denoiser_forward(x, t, emb, params, **kw))
        assert out.shape == (B, C, H, W)
        assert jnp.allclose(out, ref, atol=1e-4, rtol=1e-4), f"mismatch at {(B, C, H, W)}"

    # spec-sized input (single HW tile, single in-kernel chunk)
    check(2, 4, 16, 16, 32)
    # forced small tiles -> multi-tile HW grid, exercises the index maps
    check(2, 4, 64, 64, 32, target_step_bytes=8 * 1024)
    # bigger image -> exercises the in-kernel sublane-chunk fori_loop (S=128)
    check(2, 4, 128, 128, 32)
    # unaligned H*W -> padded lane-packing path
    check(2, 4, 16, 15, 32)

    print("KERNEL_OK")
</pallas_src>

<mosaic_0001>
module attributes {stable_mosaic.version = 11 : i64} {
  func.func @_denoiser_kernel(%arg0: i32, %arg1: i32, %arg2: memref<2x16xf32, #tpu.memory_space<smem>>, %arg3: memref<2x4xf32, #tpu.memory_space<smem>>, %arg4: memref<1x4x2x128xf32, #tpu.memory_space<vmem>>, %arg5: memref<1x4x2x128xf32, #tpu.memory_space<vmem>>) attributes {dimension_semantics = [#tpu.dimension_semantics<parallel>, #tpu.dimension_semantics<parallel>], iteration_bounds = array<i64: 2, 1>, scalar_prefetch = 0 : i64, scratch_operands = 0 : i64, tpu.core_type = #tpu.core_type<tc>, window_params = [{transform_indices = @transform_0, window_bounds = array<i64: 2, 16>}, {transform_indices = @transform_1, window_bounds = array<i64: 2, 4>}, {transform_indices = @transform_2, window_bounds = array<i64: 1, 4, 2, 128>}, {transform_indices = @transform_3, window_bounds = array<i64: 1, 4, 2, 128>}]} {
    %c0_i32 = arith.constant 0 : i32
    %c2_i32 = arith.constant 2 : i32
    %0 = arith.muli %c0_i32, %c2_i32 : i32
    %1 = tpu.assume_multiple %0, 2 : i32
    %c1_i32 = arith.constant 1 : i32
    %2 = arith.muli %arg0, %c1_i32 : i32
    %c0_i32_0 = arith.constant 0 : i32
    %3 = arith.addi %2, %c0_i32_0 : i32
    %c0 = arith.constant 0 : index
    %c0_1 = arith.constant 0 : index
    %4 = arith.index_cast %1 : i32 to index
    %c0_2 = arith.constant 0 : index
    %5 = vector.load %arg4[%c0, %c0_1, %4, %c0_2] : memref<1x4x2x128xf32, #tpu.memory_space<vmem>>, vector<1x1x2x128xf32>
    %6 = vector.shape_cast %5 : vector<1x1x2x128xf32> to vector<2x128xf32>
    %7 = arith.index_cast %3 : i32 to index
    %c0_3 = arith.constant 0 : index
    %8 = memref.load %arg2[%7, %c0_3] : memref<2x16xf32, #tpu.memory_space<smem>>
    %9 = vector.broadcast %8 : f32 to vector<2x128xf32>
    %10 = arith.mulf %9, %6 : vector<2x128xf32>
    %c0_4 = arith.constant 0 : index
    %c1 = arith.constant 1 : index
    %11 = arith.index_cast %1 : i32 to index
    %c0_5 = arith.constant 0 : index
    %12 = vector.load %arg4[%c0_4, %c1, %11, %c0_5] : memref<1x4x2x128xf32, #tpu.memory_space<vmem>>, vector<1x1x2x128xf32>
    %13 = vector.shape_cast %12 : vector<1x1x2x128xf32> to vector<2x128xf32>
    %14 = arith.index_cast %3 : i32 to index
    %c1_6 = arith.constant 1 : index
    %15 = memref.load %arg2[%14, %c1_6] : memref<2x16xf32, #tpu.memory_space<smem>>
    %16 = vector.broadcast %15 : f32 to vector<2x128xf32>
    %17 = arith.mulf %16, %13 : vector<2x128xf32>
    %18 = arith.addf %10, %17 : vector<2x128xf32>
    %c0_7 = arith.constant 0 : index
    %c2 = arith.constant 2 : index
    %19 = arith.index_cast %1 : i32 to index
    %c0_8 = arith.constant 0 : index
    %20 = vector.load %arg4[%c0_7, %c2, %19, %c0_8] : memref<1x4x2x128xf32, #tpu.memory_space<vmem>>, vector<1x1x2x128xf32>
    %21 = vector.shape_cast %20 : vector<1x1x2x128xf32> to vector<2x128xf32>
    %22 = arith.index_cast %3 : i32 to index
    %c2_9 = arith.constant 2 : index
    %23 = memref.load %arg2[%22, %c2_9] : memref<2x16xf32, #tpu.memory_space<smem>>
    %24 = vector.broadcast %23 : f32 to vector<2x128xf32>
    %25 = arith.mulf %24, %21 : vector<2x128xf32>
    %26 = arith.addf %18, %25 : vector<2x128xf32>
    %c0_10 = arith.constant 0 : index
    %c3 = arith.constant 3 : index
    %27 = arith.index_cast %1 : i32 to index
    %c0_11 = arith.constant 0 : index
    %28 = vector.load %arg4[%c0_10, %c3, %27, %c0_11] : memref<1x4x2x128xf32, #tpu.memory_space<vmem>>, vector<1x1x2x128xf32>
    %29 = vector.shape_cast %28 : vector<1x1x2x128xf32> to vector<2x128xf32>
    %30 = arith.index_cast %3 : i32 to index
    %c3_12 = arith.constant 3 : index
    %31 = memref.load %arg2[%30, %c3_12] : memref<2x16xf32, #tpu.memory_space<smem>>
    %32 = vector.broadcast %31 : f32 to vector<2x128xf32>
    %33 = arith.mulf %32, %29 : vector<2x128xf32>
    %34 = arith.addf %26, %33 : vector<2x128xf32>
    %35 = arith.index_cast %3 : i32 to index
    %c0_13 = arith.constant 0 : index
    %36 = memref.load %arg3[%35, %c0_13] : memref<2x4xf32, #tpu.memory_space<smem>>
    %37 = vector.broadcast %36 : f32 to vector<2x128xf32>
    %38 = arith.addf %34, %37 : vector<2x128xf32>
    %c0_14 = arith.constant 0 : index
    %c0_15 = arith.constant 0 : index
    %39 = arith.index_cast %1 : i32 to index
    %c0_16 = arith.constant 0 : index
    %40 = vector.load %arg5[%c0_14, %c0_15, %39, %c0_16] : memref<1x4x2x128xf32, #tpu.memory_space<vmem>>, vector<1x1x2x128xf32>
    %41 = vector.shape_cast %40 : vector<1x1x2x128xf32> to vector<2x128xf32>
    %42 = vector.shape_cast %38 : vector<2x128xf32> to vector<1x1x2x128xf32>
    tpu.vector_store %arg5[%c0_14, %c0_15, %39, %c0_16], %42 {strides = array<i32>} : memref<1x4x2x128xf32, #tpu.memory_space<vmem>>, vector<1x1x2x128xf32>,
    %c0_17 = arith.constant 0 : index
    %c0_18 = arith.constant 0 : index
    %43 = arith.index_cast %1 : i32 to index
    %c0_19 = arith.constant 0 : index
    %44 = vector.load %arg4[%c0_17, %c0_18, %43, %c0_19] : memref<1x4x2x128xf32, #tpu.memory_space<vmem>>, vector<1x1x2x128xf32>
    %45 = vector.shape_cast %44 : vector<1x1x2x128xf32> to vector<2x128xf32>
    %46 = arith.index_cast %3 : i32 to index
    %c4 = arith.constant 4 : index
    %47 = memref.load %arg2[%46, %c4] : memref<2x16xf32, #tpu.memory_space<smem>>
    %48 = vector.broadcast %47 : f32 to vector<2x128xf32>
    %49 = arith.mulf %48, %45 : vector<2x128xf32>
    %c0_20 = arith.constant 0 : index
    %c1_21 = arith.constant 1 : index
    %50 = arith.index_cast %1 : i32 to index
    %c0_22 = arith.constant 0 : index
    %51 = vector.load %arg4[%c0_20, %c1_21, %50, %c0_22] : memref<1x4x2x128xf32, #tpu.memory_space<vmem>>, vector<1x1x2x128xf32>
    %52 = vector.shape_cast %51 : vector<1x1x2x128xf32> to vector<2x128xf32>
    %53 = arith.index_cast %3 : i32 to index
    %c5 = arith.constant 5 : index
    %54 = memref.load %arg2[%53, %c5] : memref<2x16xf32, #tpu.memory_space<smem>>
    %55 = vector.broadcast %54 : f32 to vector<2x128xf32>
    %56 = arith.mulf %55, %52 : vector<2x128xf32>
    %57 = arith.addf %49, %56 : vector<2x128xf32>
    %c0_23 = arith.constant 0 : index
    %c2_24 = arith.constant 2 : index
    %58 = arith.index_cast %1 : i32 to index
    %c0_25 = arith.constant 0 : index
    %59 = vector.load %arg4[%c0_23, %c2_24, %58, %c0_25] : memref<1x4x2x128xf32, #tpu.memory_space<vmem>>, vector<1x1x2x128xf32>
    %60 = vector.shape_cast %59 : vector<1x1x2x128xf32> to vector<2x128xf32>
    %61 = arith.index_cast %3 : i32 to index
    %c6 = arith.constant 6 : index
    %62 = memref.load %arg2[%61, %c6] : memref<2x16xf32, #tpu.memory_space<smem>>
    %63 = vector.broadcast %62 : f32 to vector<2x128xf32>
    %64 = arith.mulf %63, %60 : vector<2x128xf32>
    %65 = arith.addf %57, %64 : vector<2x128xf32>
    %c0_26 = arith.constant 0 : index
    %c3_27 = arith.constant 3 : index
    %66 = arith.index_cast %1 : i32 to index
    %c0_28 = arith.constant 0 : index
    %67 = vector.load %arg4[%c0_26, %c3_27, %66, %c0_28] : memref<1x4x2x128xf32, #tpu.memory_space<vmem>>, vector<1x1x2x128xf32>
    %68 = vector.shape_cast %67 : vector<1x1x2x128xf32> to vector<2x128xf32>
    %69 = arith.index_cast %3 : i32 to index
    %c7 = arith.constant 7 : index
    %70 = memref.load %arg2[%69, %c7] : memref<2x16xf32, #tpu.memory_space<smem>>
    %71 = vector.broadcast %70 : f32 to vector<2x128xf32>
    %72 = arith.mulf %71, %68 : vector<2x128xf32>
    %73 = arith.addf %65, %72 : vector<2x128xf32>
    %74 = arith.index_cast %3 : i32 to index
    %c1_29 = arith.constant 1 : index
    %75 = memref.load %arg3[%74, %c1_29] : memref<2x4xf32, #tpu.memory_space<smem>>
    %76 = vector.broadcast %75 : f32 to vector<2x128xf32>
    %77 = arith.addf %73, %76 : vector<2x128xf32>
    %c0_30 = arith.constant 0 : index
    %c1_31 = arith.constant 1 : index
    %78 = arith.index_cast %1 : i32 to index
    %c0_32 = arith.constant 0 : index
    %79 = vector.load %arg5[%c0_30, %c1_31, %78, %c0_32] : memref<1x4x2x128xf32, #tpu.memory_space<vmem>>, vector<1x1x2x128xf32>
    %80 = vector.shape_cast %79 : vector<1x1x2x128xf32> to vector<2x128xf32>
    %81 = vector.shape_cast %77 : vector<2x128xf32> to vector<1x1x2x128xf32>
    tpu.vector_store %arg5[%c0_30, %c1_31, %78, %c0_32], %81 {strides = array<i32>} : memref<1x4x2x128xf32, #tpu.memory_space<vmem>>, vector<1x1x2x128xf32>,
    %c0_33 = arith.constant 0 : index
    %c0_34 = arith.constant 0 : index
    %82 = arith.index_cast %1 : i32 to index
    %c0_35 = arith.constant 0 : index
    %83 = vector.load %arg4[%c0_33, %c0_34, %82, %c0_35] : memref<1x4x2x128xf32, #tpu.memory_space<vmem>>, vector<1x1x2x128xf32>
    %84 = vector.shape_cast %83 : vector<1x1x2x128xf32> to vector<2x128xf32>
    %85 = arith.index_cast %3 : i32 to index
    %c8 = arith.constant 8 : index
    %86 = memref.load %arg2[%85, %c8] : memref<2x16xf32, #tpu.memory_space<smem>>
    %87 = vector.broadcast %86 : f32 to vector<2x128xf32>
    %88 = arith.mulf %87, %84 : vector<2x128xf32>
    %c0_36 = arith.constant 0 : index
    %c1_37 = arith.constant 1 : index
    %89 = arith.index_cast %1 : i32 to index
    %c0_38 = arith.constant 0 : index
    %90 = vector.load %arg4[%c0_36, %c1_37, %89, %c0_38] : memref<1x4x2x128xf32, #tpu.memory_space<vmem>>, vector<1x1x2x128xf32>
    %91 = vector.shape_cast %90 : vector<1x1x2x128xf32> to vector<2x128xf32>
    %92 = arith.index_cast %3 : i32 to index
    %c9 = arith.constant 9 : index
    %93 = memref.load %arg2[%92, %c9] : memref<2x16xf32, #tpu.memory_space<smem>>
    %94 = vector.broadcast %93 : f32 to vector<2x128xf32>
    %95 = arith.mulf %94, %91 : vector<2x128xf32>
    %96 = arith.addf %88, %95 : vector<2x128xf32>
    %c0_39 = arith.constant 0 : index
    %c2_40 = arith.constant 2 : index
    %97 = arith.index_cast %1 : i32 to index
    %c0_41 = arith.constant 0 : index
    %98 = vector.load %arg4[%c0_39, %c2_40, %97, %c0_41] : memref<1x4x2x128xf32, #tpu.memory_space<vmem>>, vector<1x1x2x128xf32>
    %99 = vector.shape_cast %98 : vector<1x1x2x128xf32> to vector<2x128xf32>
    %100 = arith.index_cast %3 : i32 to index
    %c10 = arith.constant 10 : index
    %101 = memref.load %arg2[%100, %c10] : memref<2x16xf32, #tpu.memory_space<smem>>
    %102 = vector.broadcast %101 : f32 to vector<2x128xf32>
    %103 = arith.mulf %102, %99 : vector<2x128xf32>
    %104 = arith.addf %96, %103 : vector<2x128xf32>
    %c0_42 = arith.constant 0 : index
    %c3_43 = arith.constant 3 : index
    %105 = arith.index_cast %1 : i32 to index
    %c0_44 = arith.constant 0 : index
    %106 = vector.load %arg4[%c0_42, %c3_43, %105, %c0_44] : memref<1x4x2x128xf32, #tpu.memory_space<vmem>>, vector<1x1x2x128xf32>
    %107 = vector.shape_cast %106 : vector<1x1x2x128xf32> to vector<2x128xf32>
    %108 = arith.index_cast %3 : i32 to index
    %c11 = arith.constant 11 : index
    %109 = memref.load %arg2[%108, %c11] : memref<2x16xf32, #tpu.memory_space<smem>>
    %110 = vector.broadcast %109 : f32 to vector<2x128xf32>
    %111 = arith.mulf %110, %107 : vector<2x128xf32>
    %112 = arith.addf %104, %111 : vector<2x128xf32>
    %113 = arith.index_cast %3 : i32 to index
    %c2_45 = arith.constant 2 : index
    %114 = memref.load %arg3[%113, %c2_45] : memref<2x4xf32, #tpu.memory_space<smem>>
    %115 = vector.broadcast %114 : f32 to vector<2x128xf32>
    %116 = arith.addf %112, %115 : vector<2x128xf32>
    %c0_46 = arith.constant 0 : index
    %c2_47 = arith.constant 2 : index
    %117 = arith.index_cast %1 : i32 to index
    %c0_48 = arith.constant 0 : index
    %118 = vector.load %arg5[%c0_46, %c2_47, %117, %c0_48] : memref<1x4x2x128xf32, #tpu.memory_space<vmem>>, vector<1x1x2x128xf32>
    %119 = vector.shape_cast %118 : vector<1x1x2x128xf32> to vector<2x128xf32>
    %120 = vector.shape_cast %116 : vector<2x128xf32> to vector<1x1x2x128xf32>
    tpu.vector_store %arg5[%c0_46, %c2_47, %117, %c0_48], %120 {strides = array<i32>} : memref<1x4x2x128xf32, #tpu.memory_space<vmem>>, vector<1x1x2x128xf32>,
    %c0_49 = arith.constant 0 : index
    %c0_50 = arith.constant 0 : index
    %121 = arith.index_cast %1 : i32 to index
    %c0_51 = arith.constant 0 : index
    %122 = vector.load %arg4[%c0_49, %c0_50, %121, %c0_51] : memref<1x4x2x128xf32, #tpu.memory_space<vmem>>, vector<1x1x2x128xf32>
    %123 = vector.shape_cast %122 : vector<1x1x2x128xf32> to vector<2x128xf32>
    %124 = arith.index_cast %3 : i32 to index
    %c12 = arith.constant 12 : index
    %125 = memref.load %arg2[%124, %c12] : memref<2x16xf32, #tpu.memory_space<smem>>
    %126 = vector.broadcast %125 : f32 to vector<2x128xf32>
    %127 = arith.mulf %126, %123 : vector<2x128xf32>
    %c0_52 = arith.constant 0 : index
    %c1_53 = arith.constant 1 : index
    %128 = arith.index_cast %1 : i32 to index
    %c0_54 = arith.constant 0 : index
    %129 = vector.load %arg4[%c0_52, %c1_53, %128, %c0_54] : memref<1x4x2x128xf32, #tpu.memory_space<vmem>>, vector<1x1x2x128xf32>
    %130 = vector.shape_cast %129 : vector<1x1x2x128xf32> to vector<2x128xf32>
    %131 = arith.index_cast %3 : i32 to index
    %c13 = arith.constant 13 : index
    %132 = memref.load %arg2[%131, %c13] : memref<2x16xf32, #tpu.memory_space<smem>>
    %133 = vector.broadcast %132 : f32 to vector<2x128xf32>
    %134 = arith.mulf %133, %130 : vector<2x128xf32>
    %135 = arith.addf %127, %134 : vector<2x128xf32>
    %c0_55 = arith.constant 0 : index
    %c2_56 = arith.constant 2 : index
    %136 = arith.index_cast %1 : i32 to index
    %c0_57 = arith.constant 0 : index
    %137 = vector.load %arg4[%c0_55, %c2_56, %136, %c0_57] : memref<1x4x2x128xf32, #tpu.memory_space<vmem>>, vector<1x1x2x128xf32>
    %138 = vector.shape_cast %137 : vector<1x1x2x128xf32> to vector<2x128xf32>
    %139 = arith.index_cast %3 : i32 to index
    %c14 = arith.constant 14 : index
    %140 = memref.load %arg2[%139, %c14] : memref<2x16xf32, #tpu.memory_space<smem>>
    %141 = vector.broadcast %140 : f32 to vector<2x128xf32>
    %142 = arith.mulf %141, %138 : vector<2x128xf32>
    %143 = arith.addf %135, %142 : vector<2x128xf32>
    %c0_58 = arith.constant 0 : index
    %c3_59 = arith.constant 3 : index
    %144 = arith.index_cast %1 : i32 to index
    %c0_60 = arith.constant 0 : index
    %145 = vector.load %arg4[%c0_58, %c3_59, %144, %c0_60] : memref<1x4x2x128xf32, #tpu.memory_space<vmem>>, vector<1x1x2x128xf32>
    %146 = vector.shape_cast %145 : vector<1x1x2x128xf32> to vector<2x128xf32>
    %147 = arith.index_cast %3 : i32 to index
    %c15 = arith.constant 15 : index
    %148 = memref.load %arg2[%147, %c15] : memref<2x16xf32, #tpu.memory_space<smem>>
    %149 = vector.broadcast %148 : f32 to vector<2x128xf32>
    %150 = arith.mulf %149, %146 : vector<2x128xf32>
    %151 = arith.addf %143, %150 : vector<2x128xf32>
    %152 = arith.index_cast %3 : i32 to index
    %c3_61 = arith.constant 3 : index
    %153 = memref.load %arg3[%152, %c3_61] : memref<2x4xf32, #tpu.memory_space<smem>>
    %154 = vector.broadcast %153 : f32 to vector<2x128xf32>
    %155 = arith.addf %151, %154 : vector<2x128xf32>
    %c0_62 = arith.constant 0 : index
    %c3_63 = arith.constant 3 : index
    %156 = arith.index_cast %1 : i32 to index
    %c0_64 = arith.constant 0 : index
    %157 = vector.load %arg5[%c0_62, %c3_63, %156, %c0_64] : memref<1x4x2x128xf32, #tpu.memory_space<vmem>>, vector<1x1x2x128xf32>
    %158 = vector.shape_cast %157 : vector<1x1x2x128xf32> to vector<2x128xf32>
    %159 = vector.shape_cast %155 : vector<2x128xf32> to vector<1x1x2x128xf32>
    tpu.vector_store %arg5[%c0_62, %c3_63, %156, %c0_64], %159 {strides = array<i32>} : memref<1x4x2x128xf32, #tpu.memory_space<vmem>>, vector<1x1x2x128xf32>,
    %c1_i32_65 = arith.constant 1 : i32
    return
  }
  func.func @transform_0(%arg0: i32, %arg1: i32) -> (i32, i32) {
    %c0_i32 = arith.constant 0 : i32
    %c0_i32_0 = arith.constant 0 : i32
    %c0_i32_1 = arith.constant 0 : i32
    return %c0_i32, %c0_i32_0 : i32, i32
  }
  func.func @transform_1(%arg0: i32, %arg1: i32) -> (i32, i32) {
    %c0_i32 = arith.constant 0 : i32
    %c0_i32_0 = arith.constant 0 : i32
    %c0_i32_1 = arith.constant 0 : i32
    return %c0_i32, %c0_i32_0 : i32, i32
  }
  func.func @transform_2(%arg0: i32, %arg1: i32) -> (i32, i32, i32, i32) {
    %c0_i32 = arith.constant 0 : i32
    %c0_i32_0 = arith.constant 0 : i32
    %c0_i32_1 = arith.constant 0 : i32
    return %arg0, %c0_i32, %arg1, %c0_i32_0 : i32, i32, i32, i32
  }
  func.func @transform_3(%arg0: i32, %arg1: i32) -> (i32, i32, i32, i32) {
    %c0_i32 = arith.constant 0 : i32
    %c0_i32_0 = arith.constant 0 : i32
    %c0_i32_1 = arith.constant 0 : i32
    return %arg0, %c0_i32, %arg1, %c0_i32_0 : i32, i32, i32, i32
  }
}

</mosaic_0001>

<llo_original>
// kernel: tpu_custom_call.1
$region0: #{tpu_custom_call.1}
  #allocation0 [shape = 'u32[]', space=smem, size = 0x4, offset = 0x4, fixed_abs, tag = 'smem constant byte address 0x4 - core index']
  #allocation1 [shape = 'u32[144,128]{1,0:T(1,128)}', space=vmem, size = 0x12000, scoped, tag = 'internal scratch']
  %s0 = inlined_call_operand.hbm [shape: f32[2,16], index: 0, kind: input, shape index: {}]
  %s1 = inlined_call_operand.hbm [shape: f32[2,4], index: 1, kind: input, shape index: {}]
  %s2 = inlined_call_operand.hbm [shape: f32[2,4,2,128], index: 2, kind: input, shape index: {}]
  %s3 = inlined_call_operand.hbm [shape: f32[2,4,2,128], index: 3, kind: output, shape index: {}]
  %s4 = sld [smem:[#allocation0]]
  $region57: #{tpu_custom_call.1} parent=0
    _
  %s6 = ssub.s32 1, %s4
  %s7 = scalar_select 0, %s6, %s4
  $region1: #{tpu_custom_call.1} parent=0
    #allocation2 [shape = 'u8[1024]{0}', space=smem, size = 0x400, scoped, tag = 'input window, operand 0, single buffered']
    #allocation3 [shape = 's32[2]{0}', space=sflag, size = 0x8, scoped, tag = 'scoped memory for tpu_custom_call.1']
    #allocation4 [shape = 's32[2]{0}', space=sflag, size = 0x8, scoped, tag = 'scoped memory for tpu_custom_call.1']
    #allocation5 [shape = 's32[2]{0}', space=sflag, size = 0x8, scoped, tag = 'scoped memory for tpu_custom_call.1']
    #allocation6 [shape = 'u8[1024]{0}', space=smem, size = 0x400, scoped, tag = 'input window, operand 1, single buffered']
    #allocation7 [shape = 's32[1]{0}', space=sflag, size = 0x4, scoped, tag = 'scoped memory for tpu_custom_call.1']
    #allocation8 [shape = 'u8[8192]{0}', space=vmem, size = 0x2000, scoped, tag = 'input window, operand 2']
    #allocation9 [shape = 'u8[8192]{0}', space=vmem, size = 0x2000, scoped, tag = 'output window, operand 0']
    %8 = vsyncpa [#allocation5], 0
    %9 = vsyncpa [#allocation7], 0
    %10 = vsyncpa [#allocation3], 0
    %s11 = scalar_lea.sflag [#allocation3], 1
    %12 = vsyncpa %s11, 0
    %13 = vsyncpa [#allocation4], 0
    %s14 = scalar_lea.sflag [#allocation4], 1
    %15 = vsyncpa %s14, 0
    loop: start=0, step=1, limit=4
    $region2: #{tpu_custom_call.1} parent=1 // loop_pre_header
      _
    $region3: #{tpu_custom_call.1} parent=1 // loop_header
      %s17 = sphi 0, %s21
      %p18 = scmp.ge.s32.totalorder %s17, 4
      %s24 = sphi 0, %s36
      %s25 = sphi 0, %s32
      %s26 = sphi 0, %s24
      %s27 = sphi 0, %s25
      %s28 = sphi 0, %s26
      %s29 = sphi 0, %s27
      %s37 = sphi 0, %s37
      %s39 = sphi 0, %s37
      %s40 = sphi 0, %s39
      %s54 = sphi 0, %s40
      %s58 = sphi 0, %s58
      %s60 = sphi 0, %s58
      %s61 = sphi 0, %s60
      %s75 = sphi 0, %s61
      %s83 = sphi 0, %s85
      %s86 = sphi 0, %s83
      %s87 = sphi 0, %s86
      %s103 = sphi 0, %s87
      %s111 = sphi 0, %s113
      %s114 = sphi 0, %s111
      %s115 = sphi 0, %s114
      %s131 = sphi 0, %s115
    $region4: #{tpu_custom_call.1} parent=1 // loop_header_branch
      %20 = sbr.rel (%p18) target = $region8
    $region5: #{tpu_custom_call.1} parent=1 // loop_body
      %s22 = ssub.s32 %s17, 1
      %s23 = ssub.s32 %s17, 2
      %s30 = sadd.s32 1, %s25
      %p31 = scmp.ge.s32.totalorder %s30, 1
      %s32 = scalar_select %p31, 0, %s30
      %s33 = sadd.s32 1, %s24
      %s34 = scalar_select %p31, %s33, %s24
      %p35 = scmp.ge.s32.totalorder %s34, 2
      %s36 = scalar_select %p35, 0, %s34
      %s38 = sadd.s32 %s37, 1
      %p41 = scmp.eq.s32.totalorder %s17, 1
      %p42 = scmp.ne.s32.totalorder %s37, %s39
      %p43 = scmp.eq.s32.totalorder %s17, 0
      %p44 = por %p42, %p43
      %p45 = scmp.ne.s32.totalorder %s37, %s39
      %p46 = scmp.eq.s32.totalorder %s22, 1
      %p47 = por %p45, %p46
      %p48 = scmp.ne.s32.totalorder %s39, %s40
      %p49 = scmp.eq.s32.totalorder %s22, 0
      %p50 = por %p48, %p49
      %p51 = scmp.ne.s32.totalorder %s39, %s40
      %p52 = scmp.eq.s32.totalorder %s23, 1
      %p53 = por %p51, %p52
      %p55 = scmp.ne.s32.totalorder %s40, %s54
      %p56 = scmp.eq.s32.totalorder %s23, 0
      %p57 = por %p55, %p56
      %s59 = sadd.s32 %s58, 1
      %p62 = scmp.eq.s32.totalorder %s17, 1
      %p63 = scmp.ne.s32.totalorder %s58, %s60
      %p64 = scmp.eq.s32.totalorder %s17, 0
      %p65 = por %p63, %p64
      %p66 = scmp.ne.s32.totalorder %s58, %s60
      %p67 = scmp.eq.s32.totalorder %s22, 1
      %p68 = por %p66, %p67
      %p69 = scmp.ne.s32.totalorder %s60, %s61
      %p70 = scmp.eq.s32.totalorder %s22, 0
      %p71 = por %p69, %p70
      %p72 = scmp.ne.s32.totalorder %s60, %s61
      %p73 = scmp.eq.s32.totalorder %s23, 1
      %p74 = por %p72, %p73
      %p76 = scmp.ne.s32.totalorder %s61, %s75
      %p77 = scmp.eq.s32.totalorder %s23, 0
      %p78 = por %p76, %p77
      %s79 = ssub.s32 %s24, %s36
      %s80 = ssub.s32 %s25, %s32
      %s81 = sor.u32 %s79, %s80
      %p82 = scmp.eq.s32.totalorder %s81, 0
      %s84 = sadd.s32 %s83, 1
      %s85 = scalar_select %p82, %s83, %s84
      %p88 = pneg %p82
      %p89 = scmp.eq.s32.totalorder %s17, 1
      %p90 = por %p88, %p89
      %p91 = scmp.ne.s32.totalorder %s83, %s86
      %p92 = scmp.eq.s32.totalorder %s17, 0
      %p93 = por %p91, %p92
      %p94 = scmp.ne.s32.totalorder %s83, %s86
      %p95 = scmp.eq.s32.totalorder %s22, 1
      %p96 = por %p94, %p95
      %p97 = scmp.ne.s32.totalorder %s86, %s87
      %p98 = scmp.eq.s32.totalorder %s22, 0
      %p99 = por %p97, %p98
      %p100 = scmp.ne.s32.totalorder %s86, %s87
      %p101 = scmp.eq.s32.totalorder %s23, 1
      %p102 = por %p100, %p101
      %p104 = scmp.ne.s32.totalorder %s87, %s103
      %p105 = scmp.eq.s32.totalorder %s23, 0
      %p106 = por %p104, %p105
      %s107 = ssub.s32 %s24, %s36
      %s108 = ssub.s32 %s25, %s32
      %s109 = sor.u32 %s107, %s108
      %p110 = scmp.eq.s32.totalorder %s109, 0
      %s112 = sadd.s32 %s111, 1
      %s113 = scalar_select %p110, %s111, %s112
      %p116 = pneg %p110
      %p117 = scmp.eq.s32.totalorder %s17, 1
      %p118 = por %p116, %p117
      %p119 = scmp.ne.s32.totalorder %s111, %s114
      %p120 = scmp.eq.s32.totalorder %s17, 0
      %p121 = por %p119, %p120
      %p122 = scmp.ne.s32.totalorder %s111, %s114
      %p123 = scmp.eq.s32.totalorder %s22, 1
      %p124 = por %p122, %p123
      %p125 = scmp.ne.s32.totalorder %s114, %s115
      %p126 = scmp.eq.s32.totalorder %s22, 0
      %p127 = por %p125, %p126
      %p128 = scmp.ne.s32.totalorder %s114, %s115
      %p129 = scmp.eq.s32.totalorder %s23, 1
      %p130 = por %p128, %p129
      %p132 = scmp.ne.s32.totalorder %s115, %s131
      %p133 = scmp.eq.s32.totalorder %s23, 0
      %p134 = por %p132, %p133
      %p135 = scmp.le.s32.totalorder 1, %s17
      %p136 = scmp.lt.s32.totalorder %s17, 3
      %p137 = pnand %p135, %p136
      %p138 = pneg %p137
      // Predicated region
      $region9: #{tpu_custom_call.1} parent=5 // pred_check
        _
      $region10: #{tpu_custom_call.1} parent=5 // pred_check_branch
        %140 = sbr.rel (%p137) target = $region12
      $region11: #{tpu_custom_call.1} parent=5 // pred_region
        %s141 = ssub.s32 %s17, 1
        // Predicated region
        $region13: #{tpu_custom_call.1} parent=11 // pred_check
          %p142 = pneg %p50
        $region14: #{tpu_custom_call.1} parent=11 // pred_check_branch
          %144 = sbr.rel (%p142) target = $region16
        $region15: #{tpu_custom_call.1} parent=11 // pred_region
          %s146 = ssub.s32 32, 32
          %147 = vsyncadd [#allocation5], %s146
          %150 = dma.hbm_to_smem %s0, 32, [#allocation2], [#allocation5]
        $region16: #{tpu_custom_call.1} parent=11 // pred_fallthru
          _
        // Predicated region
        $region17: #{tpu_custom_call.1} parent=11 // pred_check
          %p151 = pneg %p71
        $region18: #{tpu_custom_call.1} parent=11 // pred_check_branch
          %153 = sbr.rel (%p151) target = $region20
        $region19: #{tpu_custom_call.1} parent=11 // pred_region
          %s155 = ssub.s32 32, 32
          %156 = vsyncadd [#allocation7], %s155
          %159 = dma.hbm_to_smem %s1, 32, [#allocation6], [#allocation7]
        $region20: #{tpu_custom_call.1} parent=11 // pred_fallthru
          _
      $region12: #{tpu_custom_call.1} parent=5 // pred_fallthru
        _
      %p160 = scmp.lt.s32.totalorder %s17, 2
      // Predicated region
      $region21: #{tpu_custom_call.1} parent=5 // pred_check
        %p161 = pneg %p160
      $region22: #{tpu_custom_call.1} parent=5 // pred_check_branch
        %163 = sbr.rel (%p161) target = $region24
      $region23: #{tpu_custom_call.1} parent=5 // pred_region
        // Predicated region
        $region25: #{tpu_custom_call.1} parent=23 // pred_check
          %p164 = pneg %p93
        $region26: #{tpu_custom_call.1} parent=23 // pred_check_branch
          %166 = sbr.rel (%p164) target = $region28
        $region27: #{tpu_custom_call.1} parent=23 // pred_region
          %s167 = sand.u32 %s83, 1
          %s168 = scalar_lea.sflag [#allocation3], %s167
          %s169 = sand.u32 %s83, 1
          %s170 = smul.addr %s169, 8
          %s171 = scalar_lea.vmem [#allocation8], %s170
          %s173 = ssub.s32 128, 128
          %174 = vsyncadd %s168, %s173
          %s175 = smul.addr %s24, 4
          %s176 = sadd.s32 %s25, %s175
          %s177 = smul.addr %s176, 32
          %s178 = scalar_lea.hbm %s2, %s177
          %s179 = sshll.u32 %s171, 4
          %s180 = int_to_ptr.vmem [resolvable:$true] %s179
          %185 = dma.hbm_to_vmem [thread:$0]  %s178, 128, %s180, %s168, 32, 32, 2
        $region28: #{tpu_custom_call.1} parent=23 // pred_fallthru
          _
      $region24: #{tpu_custom_call.1} parent=5 // pred_fallthru
        _
      %p186 = scmp.le.s32.totalorder 1, %s17
      %p187 = scmp.lt.s32.totalorder %s17, 3
      %p188 = pnand %p186, %p187
      %p189 = pneg %p188
      // Predicated region
      $region29: #{tpu_custom_call.1} parent=5 // pred_check
        _
      $region30: #{tpu_custom_call.1} parent=5 // pred_check_branch
        %191 = sbr.rel (%p188) target = $region32
      $region31: #{tpu_custom_call.1} parent=5 // pred_region
        %s192 = ssub.s32 %s17, 1
        // Predicated region
        $region33: #{tpu_custom_call.1} parent=31 // pred_check
          %p193 = pneg %p50
        $region34: #{tpu_custom_call.1} parent=31 // pred_check_branch
          %195 = sbr.rel (%p193) target = $region36
        $region35: #{tpu_custom_call.1} parent=31 // pred_region
          %196 = dma.done [#allocation5], 32
        $region36: #{tpu_custom_call.1} parent=31 // pred_fallthru
          _
        // Predicated region
        $region37: #{tpu_custom_call.1} parent=31 // pred_check
          %p197 = pneg %p71
        $region38: #{tpu_custom_call.1} parent=31 // pred_check_branch
          %199 = sbr.rel (%p197) target = $region40
        $region39: #{tpu_custom_call.1} parent=31 // pred_region
          %200 = dma.done [#allocation7], 32
        $region40: #{tpu_custom_call.1} parent=31 // pred_fallthru
          _
        %s201 = sand.u32 %s86, 1
        %s202 = scalar_lea.sflag [#allocation3], %s201
        %s203 = sand.u32 %s86, 1
        %s204 = smul.addr %s203, 8
        %s205 = scalar_lea.vmem [#allocation8], %s204
        // Predicated region
        $region41: #{tpu_custom_call.1} parent=31 // pred_check
          %p206 = pneg %p99
        $region42: #{tpu_custom_call.1} parent=31 // pred_check_branch
          %208 = sbr.rel (%p206) target = $region44
        $region43: #{tpu_custom_call.1} parent=31 // pred_region
          %209 = dma.done %s202, 128
        $region44: #{tpu_custom_call.1} parent=31 // pred_fallthru
          _
        %210 = sfence
        %p211 = pneg %p50
        %p212 = pneg %p47
        %p213 = pneg %p71
        %p214 = pneg %p68
        %s215 = sand.u32 %s86, 1
        %s216 = scalar_lea.sflag [#allocation3], %s215
        %s217 = sand.u32 %s86, 1
        %s218 = smul.addr %s217, 8
        %s219 = scalar_lea.vmem [#allocation8], %s218
        %p220 = pneg %p99
        %p221 = pneg %p96
        %p222 = pneg %p127
        %p223 = pneg %p124
        %s224 = sand.u32 %s114, 1
        %s225 = scalar_lea.sflag [#allocation4], %s224
        %s226 = sand.u32 %s114, 1
        %s227 = smul.addr %s226, 8
        %s228 = scalar_lea.vmem [#allocation9], %s227
        %v229 = vld [vmem:[%s205] sm:$0x3]
        %s230 = smul.u32 %s26, 128
        %s231 = sld [smem:[#allocation2 + %s230]]
        %v232 = vstv %s231
        %v233 = vmul.f32 %v232, %v229
        %s234 = sadd.s32 0, 2
        %s235 = scalar_lea.vmem %s205, %s234 [#allocation8]
        %v236 = vld [vmem:[%s235] sm:$0x3]
        %s237 = sadd.s32 %s230, 1
        %s238 = sld [smem:[#allocation2 + %s237]]
        %v239 = vstv %s238
        %v240 = vmul.f32 %v239, %v236
        %v241 = vadd.f32 %v233, %v240
        %s242 = sadd.s32 0, 4
        %s243 = scalar_lea.vmem %s205, %s242 [#allocation8]
        %v244 = vld [vmem:[%s243] sm:$0x3]
        %s245 = sadd.s32 %s230, 2
        %s246 = sld [smem:[#allocation2 + %s245]]
        %v247 = vstv %s246
        %v248 = vmul.f32 %v247, %v244
        %v249 = vadd.f32 %v241, %v248
        %s250 = sadd.s32 0, 6
        %s251 = scalar_lea.vmem %s205, %s250 [#allocation8]
        %v252 = vld [vmem:[%s251] sm:$0x3]
        %s253 = sadd.s32 %s230, 3
        %s254 = sld [smem:[#allocation2 + %s253]]
        %v255 = vstv %s254
        %v256 = vmul.f32 %v255, %v252
        %v257 = vadd.f32 %v249, %v256
        %s258 = sld [smem:[#allocation6 + %s230]]
        %v259 = vstv %s258
        %v260 = vadd.f32 %v257, %v259
        %261 = vst [vmem:[%s228] sm:$0x3] %v260
        %v262 = vld [vmem:[%s205] sm:$0x3]
        %s263 = sadd.s32 %s230, 4
        %s264 = sld [smem:[#allocation2 + %s263]]
        %v265 = vstv %s264
        %v266 = vmul.f32 %v265, %v262
        %v267 = vld [vmem:[%s235] sm:$0x3]
        %s268 = sadd.s32 %s230, 5
        %s269 = sld [smem:[#allocation2 + %s268]]
        %v270 = vstv %s269
        %v271 = vmul.f32 %v270, %v267
        %v272 = vadd.f32 %v266, %v271
        %v273 = vld [vmem:[%s243] sm:$0x3]
        %s274 = sadd.s32 %s230, 6
        %s275 = sld [smem:[#allocation2 + %s274]]
        %v276 = vstv %s275
        %v277 = vmul.f32 %v276, %v273
        %v278 = vadd.f32 %v272, %v277
        %v279 = vld [vmem:[%s251] sm:$0x3]
        %s280 = sadd.s32 %s230, 7
        %s281 = sld [smem:[#allocation2 + %s280]]
        %v282 = vstv %s281
        %v283 = vmul.f32 %v282, %v279
        %v284 = vadd.f32 %v278, %v283
        %s285 = sld [smem:[#allocation6 + %s237]]
        %v286 = vstv %s285
        %v287 = vadd.f32 %v284, %v286
        %s288 = scalar_lea.vmem %s228, %s234 [#allocation9]
        %289 = vst [vmem:[%s288] sm:$0x3] %v287
        %v290 = vld [vmem:[%s205] sm:$0x3]
        %s291 = sadd.s32 %s230, 8
        %s292 = sld [smem:[#allocation2 + %s291]]
        %v293 = vstv %s292
        %v294 = vmul.f32 %v293, %v290
        %v295 = vld [vmem:[%s235] sm:$0x3]
        %s296 = sadd.s32 %s230, 9
        %s297 = sld [smem:[#allocation2 + %s296]]
        %v298 = vstv %s297
        %v299 = vmul.f32 %v298, %v295
        %v300 = vadd.f32 %v294, %v299
        %v301 = vld [vmem:[%s243] sm:$0x3]
        %s302 = sadd.s32 %s230, 10
        %s303 = sld [smem:[#allocation2 + %s302]]
        %v304 = vstv %s303
        %v305 = vmul.f32 %v304, %v301
        %v306 = vadd.f32 %v300, %v305
        %v307 = vld [vmem:[%s251] sm:$0x3]
        %s308 = sadd.s32 %s230, 11
        %s309 = sld [smem:[#allocation2 + %s308]]
        %v310 = vstv %s309
        %v311 = vmul.f32 %v310, %v307
        %v312 = vadd.f32 %v306, %v311
        %s313 = sld [smem:[#allocation6 + %s245]]
        %v314 = vstv %s313
        %v315 = vadd.f32 %v312, %v314
        %s316 = scalar_lea.vmem %s228, %s242 [#allocation9]
        %317 = vst [vmem:[%s316] sm:$0x3] %v315
        %v318 = vld [vmem:[%s205] sm:$0x3]
        %s319 = sadd.s32 %s230, 12
        %s320 = sld [smem:[#allocation2 + %s319]]
        %v321 = vstv %s320
        %v322 = vmul.f32 %v321, %v318
        %v323 = vld [vmem:[%s235] sm:$0x3]
        %s324 = sadd.s32 %s230, 13
        %s325 = sld [smem:[#allocation2 + %s324]]
        %v326 = vstv %s325
        %v327 = vmul.f32 %v326, %v323
        %v328 = vadd.f32 %v322, %v327
        %v329 = vld [vmem:[%s243] sm:$0x3]
        %s330 = sadd.s32 %s230, 14
        %s331 = sld [smem:[#allocation2 + %s330]]
        %v332 = vstv %s331
        %v333 = vmul.f32 %v332, %v329
        %v334 = vadd.f32 %v328, %v333
        %v335 = vld [vmem:[%s251] sm:$0x3]
        %s336 = sadd.s32 %s230, 15
        %s337 = sld [smem:[#allocation2 + %s336]]
        %v338 = vstv %s337
        %v339 = vmul.f32 %v338, %v335
        %v340 = vadd.f32 %v334, %v339
        %s341 = sld [smem:[#allocation6 + %s253]]
        %v342 = vstv %s341
        %v343 = vadd.f32 %v340, %v342
        %s344 = scalar_lea.vmem %s228, %s250 [#allocation9]
        %345 = vst [vmem:[%s344] sm:$0x3] %v343
        %s346 = sand.u32 %s114, 1
        %s347 = scalar_lea.sflag [#allocation4], %s346
        %s348 = sand.u32 %s114, 1
        %s349 = smul.addr %s348, 8
        %s350 = scalar_lea.vmem [#allocation9], %s349
        // Predicated region
        $region45: #{tpu_custom_call.1} parent=31 // pred_check
          %p351 = pneg %p124
        $region46: #{tpu_custom_call.1} parent=31 // pred_check_branch
          %353 = sbr.rel (%p351) target = $region48
        $region47: #{tpu_custom_call.1} parent=31 // pred_region
          %s355 = ssub.s32 128, 128
          %356 = vsyncadd %s347, %s355
          %s357 = smul.addr %s26, 4
          %s358 = sadd.s32 %s27, %s357
          %s359 = smul.addr %s358, 32
          %s360 = scalar_lea.hbm %s3, %s359
          %s361 = sshll.u32 %s350, 4
          %s362 = int_to_ptr.vmem [resolvable:$true] %s361
          %367 = dma.vmem_to_hbm [thread:$0]  %s362, 128, %s360, %s347, 32, 32, 2
        $region48: #{tpu_custom_call.1} parent=31 // pred_fallthru
          _
      $region32: #{tpu_custom_call.1} parent=5 // pred_fallthru
        _
      %p368 = scmp.le.s32.totalorder 2, %s17
      // Predicated region
      $region49: #{tpu_custom_call.1} parent=5 // pred_check
        %p369 = pneg %p368
      $region50: #{tpu_custom_call.1} parent=5 // pred_check_branch
        %371 = sbr.rel (%p369) target = $region52
      $region51: #{tpu_custom_call.1} parent=5 // pred_region
        %s372 = ssub.s32 %s17, 2
        // Predicated region
        $region53: #{tpu_custom_call.1} parent=51 // pred_check
          %p373 = pneg %p130
        $region54: #{tpu_custom_call.1} parent=51 // pred_check_branch
          %375 = sbr.rel (%p373) target = $region56
        $region55: #{tpu_custom_call.1} parent=51 // pred_region
          %s376 = sand.u32 %s115, 1
          %s377 = scalar_lea.sflag [#allocation4], %s376
          %s378 = sand.u32 %s115, 1
          %s379 = smul.addr %s378, 8
          %s380 = scalar_lea.vmem [#allocation9], %s379
          %381 = dma.done %s377, 128
        $region56: #{tpu_custom_call.1} parent=51 // pred_fallthru
          _
      $region52: #{tpu_custom_call.1} parent=5 // pred_fallthru
        _
    $region6: #{tpu_custom_call.1} parent=1 // loop_footer
      %s21 = sadd.s32 1, %s17
    $region7: #{tpu_custom_call.1} parent=1 // loop_footer_branch
      %16 = sbr.rel target = $region3
    $region8: #{tpu_custom_call.1} parent=1 // loop_exit
      _
    %382 = vsyncpa [#allocation3], 1
    %s383 = scalar_lea.sflag [#allocation3], 1
    %384 = vsyncpa %s383, 1
    %385 = vsyncpa [#allocation4], 1
    %s386 = scalar_lea.sflag [#allocation4], 1
    %387 = vsyncpa %s386, 1
    %388 = vsyncpa [#allocation5], 1
    %s389 = scalar_lea.sflag [#allocation5], 1
    %390 = vsyncpa %s389, 1
    %391 = vsyncpa [#allocation7], 1

</llo_original>
